<compile_context>
chip_gen: v5e
topology: v5e:2x2
jax: 0.10.0
libtpu: 0.0.40
codegen_flags: <defaults>
</compile_context>

<pallas_src>
import functools

import jax
import jax.numpy as jnp
from jax.experimental import pallas as pl
from jax.experimental.pallas import tpu as pltpu

N_EMBD = 64
HIDDEN = 4 * N_EMBD
DROPOUT = 0.0  # TODO(synk): non-zero dropout would need pltpu.prng_seed/prng_random_bits masking


def _round_up(x, m):
    return ((x + m - 1) // m) * m


def ffn_kernel(x_ref, w1_ref, b1_ref, w2_ref, b2_ref, o_ref, *, matmul_dtype):
    # x_ref: (tm, C) in the caller's dtype (cast here, not in the wrapper);
    # w1_ref: (C, H) / w2_ref: (H, C) in matmul_dtype; b1/b2: (1, H)/(1, C) f32;
    # o_ref: (tm, C) in the caller's dtype.
    x = x_ref[...].astype(matmul_dtype)
    h = jnp.dot(x, w1_ref[...], preferred_element_type=jnp.float32)
    h = jnp.maximum(h + b1_ref[...], 0.0)                      # bias + ReLU in f32
    y = jnp.dot(h.astype(matmul_dtype), w2_ref[...],
                preferred_element_type=jnp.float32)
    o_ref[...] = (y + b2_ref[...]).astype(o_ref.dtype)         # dropout p=0.0 -> identity


def feedforward(x, w1, b1, w2, b2, *, tm=2048, matmul_dtype=jnp.bfloat16):
    B, T, C = x.shape
    assert C == N_EMBD
    M = B * T

    # Row tile: large tiles amortize per-grid-step overhead; >=16 rows keeps
    # native bf16 (16,128) packing; prefer >=2 grid steps (v7x megacore).
    MIN_TILE = 16
    tm_eff = min(_round_up(tm, MIN_TILE), _round_up(M, MIN_TILE))
    if M > MIN_TILE and pl.cdiv(M, tm_eff) < 2:
        tm_eff = max(MIN_TILE, _round_up(pl.cdiv(M, 2), MIN_TILE))
    grid = (pl.cdiv(M, tm_eff),)

    # No jnp.pad and no wrapper-side astype on x: both would be extra full HBM
    # passes on a bandwidth-bound op. Pallas masks the ragged last block.
    x2d = x.reshape(M, C)
    w1m = w1.astype(matmul_dtype)
    w2m = w2.astype(matmul_dtype)
    b1_2d = b1.reshape(1, HIDDEN).astype(jnp.float32)
    b2_2d = b2.reshape(1, C).astype(jnp.float32)

    io_item = jnp.dtype(x.dtype).itemsize
    w_item = jnp.dtype(matmul_dtype).itemsize
    cost = pl.CostEstimate(
        flops=2 * M * (C * HIDDEN + HIDDEN * C),
        transcendentals=0,
        bytes_accessed=int(
            M * C * 2 * io_item                                 # x in + y out
            + (C * HIDDEN + HIDDEN * C) * w_item                # W1 + W2 (loaded once)
            + (HIDDEN + C) * 4),                                # biases (f32)
    )

    kernel = functools.partial(ffn_kernel, matmul_dtype=matmul_dtype)

    out2d = pl.pallas_call(
        kernel,
        out_shape=jax.ShapeDtypeStruct((M, C), x.dtype),
        grid_spec=pltpu.PrefetchScalarGridSpec(
            num_scalar_prefetch=0,
            grid=grid,
            in_specs=[
                pl.BlockSpec((tm_eff, C), lambda i: (i, 0)),      # x rows (streamed)
                pl.BlockSpec((C, HIDDEN), lambda i: (0, 0)),      # W1 (constant idx -> resident)
                pl.BlockSpec((1, HIDDEN), lambda i: (0, 0)),      # b1
                pl.BlockSpec((HIDDEN, C), lambda i: (0, 0)),      # W2 (resident)
                pl.BlockSpec((1, C), lambda i: (0, 0)),           # b2
            ],
            out_specs=pl.BlockSpec((tm_eff, C), lambda i: (i, 0)),
        ),
        compiler_params=pltpu.CompilerParams(
            dimension_semantics=("parallel",)),
        cost_estimate=cost,
    )(x2d, w1m, b1_2d, w2m, b2_2d)

    return out2d.reshape(B, T, C)


def init_params(key):
    # Deterministic init mimicking nn.Linear's U(-1/sqrt(fan_in), 1/sqrt(fan_in))
    k1, k2, k3, k4 = jax.random.split(key, 4)
    lim1 = 1.0 / jnp.sqrt(N_EMBD)
    lim2 = 1.0 / jnp.sqrt(HIDDEN)
    w1 = jax.random.uniform(k1, (N_EMBD, HIDDEN), jnp.float32, -lim1, lim1)
    b1 = jax.random.uniform(k2, (HIDDEN,), jnp.float32, -lim1, lim1)
    w2 = jax.random.uniform(k3, (HIDDEN, N_EMBD), jnp.float32, -lim2, lim2)
    b2 = jax.random.uniform(k4, (N_EMBD,), jnp.float32, -lim2, lim2)
    return w1, b1, w2, b2


if __name__ == "__main__":
    key = jax.random.PRNGKey(0)
    kx, kp = jax.random.split(key)

    B, T = 2, 8
    x = jax.random.normal(kx, (B, T, N_EMBD), jnp.float32)
    w1, b1, w2, b2 = init_params(kp)

    # plain-JAX reference
    ref = jnp.maximum(x @ w1 + b1, 0.0) @ w2 + b2

    # f32 matmul path: exact semantics, tight tolerance
    out_f32 = feedforward(x, w1, b1, w2, b2, matmul_dtype=jnp.float32)
    jax.block_until_ready(out_f32)
    assert out_f32.shape == (B, T, N_EMBD)
    assert jnp.allclose(out_f32, ref, atol=1e-4, rtol=1e-4)

    # default bf16-matmul / f32-accumulate path: looser tolerance
    out = feedforward(x, w1, b1, w2, b2)
    jax.block_until_ready(out)
    assert out.shape == (B, T, N_EMBD)
    assert jnp.allclose(out, ref, atol=5e-2, rtol=5e-2)

    print("KERNEL_OK")
</pallas_src>

<mosaic_0001>
module attributes {stable_mosaic.version = 11 : i64} {
  func.func @ffn_kernel(%arg0: i32, %arg1: memref<16x64xf32, #tpu.memory_space<vmem>>, %arg2: memref<64x256xf32, #tpu.memory_space<vmem>>, %arg3: memref<1x256xf32, #tpu.memory_space<vmem>>, %arg4: memref<256x64xf32, #tpu.memory_space<vmem>>, %arg5: memref<1x64xf32, #tpu.memory_space<vmem>>, %arg6: memref<16x64xf32, #tpu.memory_space<vmem>>) attributes {dimension_semantics = [#tpu.dimension_semantics<parallel>], iteration_bounds = array<i64: 1>, scalar_prefetch = 0 : i64, scratch_operands = 0 : i64, tpu.core_type = #tpu.core_type<tc>, window_params = [{transform_indices = @transform_0, window_bounds = array<i64: 16, 64>}, {pipeline_mode = #tpu.pipeline_mode<synchronous>, transform_indices = @transform_1, window_bounds = array<i64: 64, 256>}, {pipeline_mode = #tpu.pipeline_mode<synchronous>, transform_indices = @transform_2, window_bounds = array<i64: 1, 256>}, {pipeline_mode = #tpu.pipeline_mode<synchronous>, transform_indices = @transform_3, window_bounds = array<i64: 256, 64>}, {pipeline_mode = #tpu.pipeline_mode<synchronous>, transform_indices = @transform_4, window_bounds = array<i64: 1, 64>}, {transform_indices = @transform_5, window_bounds = array<i64: 16, 64>}]} {
    %c0 = arith.constant 0 : index
    %c0_0 = arith.constant 0 : index
    %0 = vector.load %arg1[%c0, %c0_0] : memref<16x64xf32, #tpu.memory_space<vmem>>, vector<16x64xf32>
    %c0_1 = arith.constant 0 : index
    %c0_2 = arith.constant 0 : index
    %1 = vector.load %arg2[%c0_1, %c0_2] : memref<64x256xf32, #tpu.memory_space<vmem>>, vector<64x256xf32>
    %cst = arith.constant dense<0.000000e+00> : vector<16x256xf32>
    %2 = tpu.matmul %0, %1, %cst {dimension_numbers = #tpu.dot_dimension_numbers<[1], [0], [0], [1], [0, 0, 1, 1], [], []>} : vector<16x64xf32>, vector<64x256xf32>, vector<16x256xf32> -> vector<16x256xf32>
    %c0_3 = arith.constant 0 : index
    %c0_4 = arith.constant 0 : index
    %3 = vector.load %arg3[%c0_3, %c0_4] : memref<1x256xf32, #tpu.memory_space<vmem>>, vector<1x256xf32>
    %4 = vector.broadcast %3 : vector<1x256xf32> to vector<16x256xf32>
    %5 = arith.addf %2, %4 : vector<16x256xf32>
    %cst_5 = arith.constant 0.000000e+00 : f32
    %6 = vector.broadcast %cst_5 : f32 to vector<16x256xf32>
    %7 = arith.maximumf %5, %6 : vector<16x256xf32>
    %c0_6 = arith.constant 0 : index
    %c0_7 = arith.constant 0 : index
    %8 = vector.load %arg4[%c0_6, %c0_7] : memref<256x64xf32, #tpu.memory_space<vmem>>, vector<256x64xf32>
    %cst_8 = arith.constant dense<0.000000e+00> : vector<16x64xf32>
    %9 = tpu.matmul %7, %8, %cst_8 {dimension_numbers = #tpu.dot_dimension_numbers<[1], [0], [0], [1], [0, 0, 1, 1], [], []>} : vector<16x256xf32>, vector<256x64xf32>, vector<16x64xf32> -> vector<16x64xf32>
    %c0_9 = arith.constant 0 : index
    %c0_10 = arith.constant 0 : index
    %10 = vector.load %arg5[%c0_9, %c0_10] : memref<1x64xf32, #tpu.memory_space<vmem>>, vector<1x64xf32>
    %11 = vector.broadcast %10 : vector<1x64xf32> to vector<16x64xf32>
    %12 = arith.addf %9, %11 : vector<16x64xf32>
    %c0_11 = arith.constant 0 : index
    %c0_12 = arith.constant 0 : index
    %13 = vector.load %arg6[%c0_11, %c0_12] : memref<16x64xf32, #tpu.memory_space<vmem>>, vector<16x64xf32>
    tpu.vector_store %arg6[%c0_11, %c0_12], %12 {strides = array<i32>} : memref<16x64xf32, #tpu.memory_space<vmem>>, vector<16x64xf32>,
    return
  }
  func.func @transform_0(%arg0: i32) -> (i32, i32) {
    %c0_i32 = arith.constant 0 : i32
    %c0_i32_0 = arith.constant 0 : i32
    return %arg0, %c0_i32 : i32, i32
  }
  func.func @transform_1(%arg0: i32) -> (i32, i32) {
    %c0_i32 = arith.constant 0 : i32
    %c0_i32_0 = arith.constant 0 : i32
    %c0_i32_1 = arith.constant 0 : i32
    return %c0_i32, %c0_i32_0 : i32, i32
  }
  func.func @transform_2(%arg0: i32) -> (i32, i32) {
    %c0_i32 = arith.constant 0 : i32
    %c0_i32_0 = arith.constant 0 : i32
    %c0_i32_1 = arith.constant 0 : i32
    return %c0_i32, %c0_i32_0 : i32, i32
  }
  func.func @transform_3(%arg0: i32) -> (i32, i32) {
    %c0_i32 = arith.constant 0 : i32
    %c0_i32_0 = arith.constant 0 : i32
    %c0_i32_1 = arith.constant 0 : i32
    return %c0_i32, %c0_i32_0 : i32, i32
  }
  func.func @transform_4(%arg0: i32) -> (i32, i32) {
    %c0_i32 = arith.constant 0 : i32
    %c0_i32_0 = arith.constant 0 : i32
    %c0_i32_1 = arith.constant 0 : i32
    return %c0_i32, %c0_i32_0 : i32, i32
  }
  func.func @transform_5(%arg0: i32) -> (i32, i32) {
    %c0_i32 = arith.constant 0 : i32
    %c0_i32_0 = arith.constant 0 : i32
    return %arg0, %c0_i32 : i32, i32
  }
}

</mosaic_0001>

<llo_original>
// kernel: tpu_custom_call.1
$region0: #{tpu_custom_call.1}
  #allocation0 [shape = 'u32[]', space=smem, size = 0x4, offset = 0x4, fixed_abs, tag = 'smem constant byte address 0x4 - core index']
  #allocation1 [shape = 'u32[72,128]{1,0:T(1,128)}', space=vmem, size = 0x9000, scoped, tag = 'internal scratch']
  %s0 = inlined_call_operand.vmem [shape: f32[16,64], index: 0, kind: input, shape index: {}]
  %s1 = inlined_call_operand.vmem [shape: f32[64,256], index: 1, kind: input, shape index: {}]
  %s2 = inlined_call_operand.vmem [shape: f32[1,256], index: 2, kind: input, shape index: {}]
  %s3 = inlined_call_operand.vmem [shape: f32[256,64], index: 3, kind: input, shape index: {}]
  %s4 = inlined_call_operand.vmem [shape: f32[1,64], index: 4, kind: input, shape index: {}]
  %s5 = inlined_call_operand.hbm [shape: f32[16,64], index: 5, kind: output, shape index: {}]
  %s6 = sld [smem:[#allocation0]]
  $region30: #{tpu_custom_call.1} parent=0
    _
  %s8 = ssub.s32 1, %s6
  %s9 = scalar_select 0, %s8, %s6
  $region1: #{tpu_custom_call.1} parent=0
    #allocation2 [shape = 'u8[8192]{0}', space=vmem, size = 0x2000, scoped, tag = 'output window, operand 0, single buffered']
    #allocation3 [shape = 's32[1]{0}', space=sflag, size = 0x4, scoped, tag = 'scoped memory for tpu_custom_call.1']
    %10 = vsyncpa [#allocation3], 0
    // Predicated region
    $region2: #{tpu_custom_call.1} parent=1 // pred_check
      _
    $region3: #{tpu_custom_call.1} parent=1 // pred_check_branch
      %12 = sbr.rel (0) target = $region5
    $region4: #{tpu_custom_call.1} parent=1 // pred_region
      _
    $region5: #{tpu_custom_call.1} parent=1 // pred_fallthru
      _
    // Predicated region
    $region6: #{tpu_custom_call.1} parent=1 // pred_check
      _
    $region7: #{tpu_custom_call.1} parent=1 // pred_check_branch
      %14 = sbr.rel (0) target = $region9
    $region8: #{tpu_custom_call.1} parent=1 // pred_region
      _
    $region9: #{tpu_custom_call.1} parent=1 // pred_fallthru
      _
    // Predicated region
    $region10: #{tpu_custom_call.1} parent=1 // pred_check
      _
    $region11: #{tpu_custom_call.1} parent=1 // pred_check_branch
      %16 = sbr.rel (0) target = $region13
    $region12: #{tpu_custom_call.1} parent=1 // pred_region
      _
    $region13: #{tpu_custom_call.1} parent=1 // pred_fallthru
      _
    // Predicated region
    $region14: #{tpu_custom_call.1} parent=1 // pred_check
      _
    $region15: #{tpu_custom_call.1} parent=1 // pred_check_branch
      %18 = sbr.rel (0) target = $region17
    $region16: #{tpu_custom_call.1} parent=1 // pred_region
      _
    $region17: #{tpu_custom_call.1} parent=1 // pred_fallthru
      _
    // Predicated region
    $region18: #{tpu_custom_call.1} parent=1 // pred_check
      _
    $region19: #{tpu_custom_call.1} parent=1 // pred_check_branch
      %20 = sbr.rel (0) target = $region21
    $region20: #{tpu_custom_call.1} parent=1 // pred_region
      _
    $region21: #{tpu_custom_call.1} parent=1 // pred_fallthru
      _
    %v21 = vld [vmem:[%s0] sm:$0xff]
    %v22 = vld [vmem:[%s0 + $0x8] sm:$0xff]
    %v23 = vld [vmem:[%s1] sm:$0xff]
    %v24 = vld [vmem:[%s1 + $0x8] sm:$0xff]
    %v25 = vld [vmem:[%s1 + $0x10] sm:$0xff]
    %v26 = vld [vmem:[%s1 + $0x18] sm:$0xff]
    %v27 = vld [vmem:[%s1 + $0x20] sm:$0xff]
    %v28 = vld [vmem:[%s1 + $0x28] sm:$0xff]
    %v29 = vld [vmem:[%s1 + $0x30] sm:$0xff]
    %v30 = vld [vmem:[%s1 + $0x38] sm:$0xff]
    %v31 = vld [vmem:[%s1 + $0x40] sm:$0xff]
    %v32 = vld [vmem:[%s1 + $0x48] sm:$0xff]
    %v33 = vld [vmem:[%s1 + $0x50] sm:$0xff]
    %v34 = vld [vmem:[%s1 + $0x58] sm:$0xff]
    %v35 = vld [vmem:[%s1 + $0x60] sm:$0xff]
    %v36 = vld [vmem:[%s1 + $0x68] sm:$0xff]
    %v37 = vld [vmem:[%s1 + $0x70] sm:$0xff]
    %v38 = vld [vmem:[%s1 + $0x78] sm:$0xff]
    %v39 = vld [vmem:[%s2] sm:$0x3]
    %v41 = vperm.slane %v39, 0
    %v42 = vperm.slane %v39, 1
    %vm45 = vcmask 523264
    %v47 = vsel %vm45, %v21, 0
    %v50 = vsel %vm45, %v22, 0
    %52 = vmatpush.msra.mxu0 0.0
    %53 = vmatpush.msra.mxu0 0.0
    %54 = vmatpush.msra.mxu0 0.0
    %55 = vmatpush.msra.mxu0 0.0
    %56 = vmatpush.msra.mxu0 0.0
    %57 = vmatpush.msra.mxu0 0.0
    %58 = vmatpush.msra.mxu0 0.0
    %59 = vmatpush.msra.mxu0 0.0
    %60 = vmatpush.msra.mxu0 %v37
    %61 = vmatpush.msra.mxu0 %v35
    %62 = vmatpush.msra.mxu0 %v33
    %63 = vmatpush.msra.mxu0 %v31
    %64 = vmatpush.msra.mxu0 %v29
    %65 = vmatpush.msra.mxu0 %v27
    %66 = vmatpush.msra.mxu0 %v25
    %67 = vmatpush.msra.mxu0 %v23
    %68 = vmatmul.f32.gmra.mxu0 %v47
    %v69 = vpop.f32.mrf.mxu0
    %v70 = vadd.f32 %v41, %v69
    %71 = vmatmul.f32.gmra.mxu0 %v50
    %v72 = vpop.f32.mrf.mxu0
    %v73 = vadd.f32 %v41, %v72
    %74 = vdwg.mxu0
    %75 = vmatpush.msra.mxu0 0.0
    %76 = vmatpush.msra.mxu0 0.0
    %77 = vmatpush.msra.mxu0 0.0
    %78 = vmatpush.msra.mxu0 0.0
    %79 = vmatpush.msra.mxu0 0.0
    %80 = vmatpush.msra.mxu0 0.0
    %81 = vmatpush.msra.mxu0 0.0
    %82 = vmatpush.msra.mxu0 0.0
    %83 = vmatpush.msra.mxu0 %v38
    %84 = vmatpush.msra.mxu0 %v36
    %85 = vmatpush.msra.mxu0 %v34
    %86 = vmatpush.msra.mxu0 %v32
    %87 = vmatpush.msra.mxu0 %v30
    %88 = vmatpush.msra.mxu0 %v28
    %89 = vmatpush.msra.mxu0 %v26
    %90 = vmatpush.msra.mxu0 %v24
    %91 = vmatmul.f32.gmra.mxu0 %v47
    %v92 = vpop.f32.mrf.mxu0
    %v93 = vadd.f32 %v42, %v92
    %94 = vmatmul.f32.gmra.mxu0 %v50
    %v95 = vpop.f32.mrf.mxu0
    %v96 = vadd.f32 %v42, %v95
    %97 = vdwg.mxu0
    %v98 = vmax.f32 %v70, 0.0
    %v99 = vmax.f32 %v93, 0.0
    %v100 = vmax.f32 %v73, 0.0
    %v101 = vmax.f32 %v96, 0.0
    %v102 = vld [vmem:[%s3] sm:$0xff]
    %v103 = vld [vmem:[%s3 + $0x8] sm:$0xff]
    %v104 = vld [vmem:[%s3 + $0x10] sm:$0xff]
    %v105 = vld [vmem:[%s3 + $0x18] sm:$0xff]
    %v106 = vld [vmem:[%s3 + $0x20] sm:$0xff]
    %v107 = vld [vmem:[%s3 + $0x28] sm:$0xff]
    %v108 = vld [vmem:[%s3 + $0x30] sm:$0xff]
    %v109 = vld [vmem:[%s3 + $0x38] sm:$0xff]
    %v110 = vld [vmem:[%s3 + $0x40] sm:$0xff]
    %v111 = vld [vmem:[%s3 + $0x48] sm:$0xff]
    %v112 = vld [vmem:[%s3 + $0x50] sm:$0xff]
    %v113 = vld [vmem:[%s3 + $0x58] sm:$0xff]
    %v114 = vld [vmem:[%s3 + $0x60] sm:$0xff]
    %v115 = vld [vmem:[%s3 + $0x68] sm:$0xff]
    %v116 = vld [vmem:[%s3 + $0x70] sm:$0xff]
    %v117 = vld [vmem:[%s3 + $0x78] sm:$0xff]
    %v118 = vld [vmem:[%s3 + $0x80] sm:$0xff]
    %v119 = vld [vmem:[%s3 + $0x88] sm:$0xff]
    %v120 = vld [vmem:[%s3 + $0x90] sm:$0xff]
    %v121 = vld [vmem:[%s3 + $0x98] sm:$0xff]
    %v122 = vld [vmem:[%s3 + $0xa0] sm:$0xff]
    %v123 = vld [vmem:[%s3 + $0xa8] sm:$0xff]
    %v124 = vld [vmem:[%s3 + $0xb0] sm:$0xff]
    %v125 = vld [vmem:[%s3 + $0xb8] sm:$0xff]
    %v126 = vld [vmem:[%s3 + $0xc0] sm:$0xff]
    %v127 = vld [vmem:[%s3 + $0xc8] sm:$0xff]
    %v128 = vld [vmem:[%s3 + $0xd0] sm:$0xff]
    %v129 = vld [vmem:[%s3 + $0xd8] sm:$0xff]
    %v130 = vld [vmem:[%s3 + $0xe0] sm:$0xff]
    %v131 = vld [vmem:[%s3 + $0xe8] sm:$0xff]
    %v132 = vld [vmem:[%s3 + $0xf0] sm:$0xff]
    %v133 = vld [vmem:[%s3 + $0xf8] sm:$0xff]
    %v134 = vld [vmem:[%s4] sm:$0x1]
    %v136 = vperm.slane %v134, 0
    %138 = vmatpush.msra.mxu0 %v117
    %139 = vmatpush.msra.mxu0 %v116
    %140 = vmatpush.msra.mxu0 %v115
    %141 = vmatpush.msra.mxu0 %v114
    %142 = vmatpush.msra.mxu0 %v113
    %143 = vmatpush.msra.mxu0 %v112
    %144 = vmatpush.msra.mxu0 %v111
    %145 = vmatpush.msra.mxu0 %v110
    %146 = vmatpush.msra.mxu0 %v109
    %147 = vmatpush.msra.mxu0 %v108
    %148 = vmatpush.msra.mxu0 %v107
    %149 = vmatpush.msra.mxu0 %v106
    %150 = vmatpush.msra.mxu0 %v105
    %151 = vmatpush.msra.mxu0 %v104
    %152 = vmatpush.msra.mxu0 %v103
    %153 = vmatpush.msra.mxu0 %v102
    %154 = vmatmul.f32.gmra.mxu0 %v98
    %v155 = vpop.f32.mrf.mxu0
    %v156 = vadd.f32 %v136, %v155
    %157 = vmatmul.f32.gmra.mxu0 %v100
    %v158 = vpop.f32.mrf.mxu0
    %v159 = vadd.f32 %v136, %v158
    %160 = vdwg.mxu0
    %161 = vmatpush.msra.mxu0 %v133
    %162 = vmatpush.msra.mxu0 %v132
    %163 = vmatpush.msra.mxu0 %v131
    %164 = vmatpush.msra.mxu0 %v130
    %165 = vmatpush.msra.mxu0 %v129
    %166 = vmatpush.msra.mxu0 %v128
    %167 = vmatpush.msra.mxu0 %v127
    %168 = vmatpush.msra.mxu0 %v126
    %169 = vmatpush.msra.mxu0 %v125
    %170 = vmatpush.msra.mxu0 %v124
    %171 = vmatpush.msra.mxu0 %v123
    %172 = vmatpush.msra.mxu0 %v122
    %173 = vmatpush.msra.mxu0 %v121
    %174 = vmatpush.msra.mxu0 %v120
    %175 = vmatpush.msra.mxu0 %v119
    %176 = vmatpush.msra.mxu0 %v118
    %177 = vmatmul.f32.gmra.mxu0 %v99
    %v178 = vpop.f32.mrf.mxu0
    %v179 = vadd.f32 %v156, %v178
    %180 = vmatmul.f32.gmra.mxu0 %v101
    %v181 = vpop.f32.mrf.mxu0
    %v182 = vadd.f32 %v159, %v181
    %183 = vdwg.mxu0
    %184 = vst.msk [vmem:[#allocation2] sm:$0xff] %vm45, %v179
    %185 = vst.msk [vmem:[#allocation2 + $0x8] sm:$0xff] %vm45, %v182
    // Predicated region
    $region22: #{tpu_custom_call.1} parent=1 // pred_check
      _
    $region23: #{tpu_custom_call.1} parent=1 // pred_check_branch
      %187 = sbr.rel (0) target = $region25
    $region24: #{tpu_custom_call.1} parent=1 // pred_region
      %189 = vsyncadd [#allocation3], 0
      %s190 = sshll.u32 [#allocation2], 4
      %s191 = int_to_ptr.vmem [resolvable:$true] %s190
      %s192 = sshll.u32 %s5, 4
      %s193 = int_to_ptr.hbm [resolvable:$true] %s192
      %198 = dma.vmem_to_hbm [thread:$0]  %s191, 256, %s193, [#allocation3], 128, 128, 8
    $region25: #{tpu_custom_call.1} parent=1 // pred_fallthru
      _
    // Predicated region
    $region26: #{tpu_custom_call.1} parent=1 // pred_check
      _
    $region27: #{tpu_custom_call.1} parent=1 // pred_check_branch
      %200 = sbr.rel (0) target = $region29
    $region28: #{tpu_custom_call.1} parent=1 // pred_region
      %202 = dma.done [#allocation3], 256
    $region29: #{tpu_custom_call.1} parent=1 // pred_fallthru
      _
    %203 = vsyncpa [#allocation3], 1

</llo_original>
